<compile_context>
chip_gen: v6e
topology: v6e:2x2x1
jax: 0.10.0
libtpu: 0.0.40
codegen_flags: <defaults>
</compile_context>

<pallas_src>
import jax
import jax.numpy as jnp
from jax.experimental import pallas as pl
from jax.experimental.pallas import tpu as pltpu

# Weight stacks up to this size stay fully resident in VMEM (single DMA).
_VMEM_WEIGHT_BUDGET_BYTES = 16 * 1024 * 1024


def _make_lstm_kernel(in_pad, hid_dim, mm_dtype, weights_resident):
    """Fused multi-layer LSTM kernel body.

    in_pad : padded per-layer input width D (= max(emb_dim, hid_dim))
    hid_dim: H
    mm_dtype: dtype fed to the MXU matmul (e.g. bfloat16)
    weights_resident: True -> w_ref/b_ref hold ALL layers (index with l);
                      False -> w_ref/b_ref hold the current layer's slab only.
    """
    D, H = in_pad, hid_dim

    def kernel(x_ref, h0_ref, c0_ref, w_ref, b_ref,      # inputs
               out_ref, h_out_ref, c_out_ref,            # outputs
               h_scr, c_scr, xh_scr):                    # VMEM scratch
        t = pl.program_id(0)
        l = pl.program_id(1)
        n_t = pl.num_programs(0)
        n_l = pl.num_programs(1)

        # --- first timestep: load this layer's initial state into resident VMEM.
        @pl.when(t == 0)
        def _():
            h_scr[l] = h0_ref[l].astype(jnp.float32)
            c_scr[l] = c0_ref[l].astype(jnp.float32)

        # --- build the [input | h_prev_t] slab for the single fused matmul.
        @pl.when(l == 0)
        def _():
            xh_scr[:, :D] = x_ref[0].astype(jnp.float32)

        @pl.when(l > 0)
        def _():
            xh_scr[:, :H] = h_scr[l - 1]          # output of the layer below
            if D > H:                              # static: pad to D with zeros
                # (weight rows [H:D] are zero for layers > 0, so this is only
                #  for numerical hygiene; it compiles out when D == H)
                xh_scr[:, H:D] = jnp.zeros((xh_scr.shape[0], D - H),
                                           jnp.float32)

        xh_scr[:, D:] = h_scr[l]                   # this layer's previous h

        if weights_resident:
            w_l = w_ref[l]                         # (D+H, 4H) slab, dynamic idx
            b_l = b_ref[l]                         # (1, 4H)
        else:
            w_l = w_ref[0]
            b_l = b_ref[0]

        # --- one MXU matmul for all four gates: (B, D+H) @ (D+H, 4H).
        gates = jnp.dot(xh_scr[...].astype(mm_dtype), w_l,
                        preferred_element_type=jnp.float32) + b_l

        i_g = jax.nn.sigmoid(gates[:, 0 * H:1 * H])
        f_g = jax.nn.sigmoid(gates[:, 1 * H:2 * H])
        g_g = jnp.tanh(gates[:, 2 * H:3 * H])
        o_g = jax.nn.sigmoid(gates[:, 3 * H:4 * H])

        c_new = f_g * c_scr[l] + i_g * g_g
        h_new = o_g * jnp.tanh(c_new)
        c_scr[l] = c_new
        h_scr[l] = h_new

        # top layer's hidden state is the decoder output for this timestep.
        @pl.when(l == n_l - 1)
        def _():
            out_ref[0] = h_new.astype(out_ref.dtype)

        # last grid step: write back the full recurrent state once.
        @pl.when(jnp.logical_and(t == n_t - 1, l == n_l - 1))
        def _():
            h_out_ref[...] = h_scr[...].astype(h_out_ref.dtype)
            c_out_ref[...] = c_scr[...].astype(c_out_ref.dtype)

    return kernel


@jax.jit
def cdbk_decoder_forward(x, hidden, cell, w_stacked, b_stacked):
    """x:(S,B,E)  hidden/cell:(L,B,H)  w_stacked:(L,D+H,4H)  b_stacked:(L,1,4H)."""
    S, B, E = x.shape
    L, _, H = hidden.shape
    D = w_stacked.shape[1] - H                     # padded per-layer input width

    x_p = x if E == D else jnp.pad(x, ((0, 0), (0, 0), (0, D - E)))

    w_bytes = w_stacked.size * jnp.dtype(w_stacked.dtype).itemsize
    weights_resident = w_bytes <= _VMEM_WEIGHT_BUDGET_BYTES

    kernel = _make_lstm_kernel(D, H, w_stacked.dtype, weights_resident)

    if weights_resident:
        # Single resident block: weight stack is DMA'd from HBM exactly once.
        w_spec = pl.BlockSpec((L, D + H, 4 * H), lambda t, l: (0, 0, 0))
        b_spec = pl.BlockSpec((L, 1, 4 * H), lambda t, l: (0, 0, 0))
    else:
        # Fallback: stream one layer slab per grid step (pipelined by Pallas).
        w_spec = pl.BlockSpec((1, D + H, 4 * H), lambda t, l: (l, 0, 0))
        b_spec = pl.BlockSpec((1, 1, 4 * H), lambda t, l: (l, 0, 0))

    out, h_out, c_out = pl.pallas_call(
        kernel,
        out_shape=(
            jax.ShapeDtypeStruct((S, B, H), x.dtype),
            jax.ShapeDtypeStruct((L, B, H), hidden.dtype),
            jax.ShapeDtypeStruct((L, B, H), cell.dtype),
        ),
        grid_spec=pltpu.PrefetchScalarGridSpec(
            num_scalar_prefetch=0,
            grid=(S, L),
            in_specs=[
                pl.BlockSpec((1, B, D), lambda t, l: (t, 0, 0)),    # x (per t)
                pl.BlockSpec((L, B, H), lambda t, l: (0, 0, 0)),    # h0 (once)
                pl.BlockSpec((L, B, H), lambda t, l: (0, 0, 0)),    # c0 (once)
                w_spec,                                             # W
                b_spec,                                             # b
            ],
            out_specs=(
                pl.BlockSpec((1, B, H), lambda t, l: (t, 0, 0)),    # output seq
                pl.BlockSpec((L, B, H), lambda t, l: (0, 0, 0)),    # final h
                pl.BlockSpec((L, B, H), lambda t, l: (0, 0, 0)),    # final c
            ),
            scratch_shapes=[
                pltpu.VMEM((L, B, H), jnp.float32),     # resident h state
                pltpu.VMEM((L, B, H), jnp.float32),     # resident c state
                pltpu.VMEM((B, D + H), jnp.float32),    # [x | h] matmul slab
            ],
        ),
        compiler_params=pltpu.CompilerParams(
            # time and layer axes are sequentially dependent
            dimension_semantics=("arbitrary", "arbitrary")),
    )(x_p, hidden, cell, w_stacked, b_stacked)

    return out, h_out, c_out


class CdBkDecoderPallas:
    """Pallas/JAX port of CdBkDecoder (nn.LSTM decoder, eval-mode dropout)."""

    def __init__(self, emb_dim, hid_dim, n_layers, dropout, key,
                 param_dtype=jnp.bfloat16):
        self.emb_dim = emb_dim
        self.hid_dim = hid_dim
        self.n_layers = n_layers
        self.dropout = dropout  # TODO(synk): stochastic dropout only applies in
        #                          training mode; eval-mode identity implemented.

        D = max(emb_dim, hid_dim)          # common (padded) per-layer input width
        H = hid_dim
        bound = 1.0 / (hid_dim ** 0.5)

        w = jnp.zeros((n_layers, D + H, 4 * H), jnp.float32)
        b = jnp.zeros((n_layers, 1, 4 * H), jnp.float32)
        for layer in range(n_layers):
            in_dim = emb_dim if layer == 0 else hid_dim
            key, k1, k2, k3, k4 = jax.random.split(key, 5)
            # PyTorch LSTM parameter shapes / gate order [i | f | g | o]:
            w_ih = jax.random.uniform(k1, (4 * H, in_dim), jnp.float32,
                                      -bound, bound)
            w_hh = jax.random.uniform(k2, (4 * H, H), jnp.float32, -bound, bound)
            b_ih = jax.random.uniform(k3, (4 * H,), jnp.float32, -bound, bound)
            b_hh = jax.random.uniform(k4, (4 * H,), jnp.float32, -bound, bound)
            # Pack [W_ih^T (zero-padded rows to D) ; W_hh^T] and fold biases.
            w = w.at[layer, :in_dim, :].set(w_ih.T)
            w = w.at[layer, D:, :].set(w_hh.T)
            b = b.at[layer, 0, :].set(b_ih + b_hh)

        self.w_stacked = w.astype(param_dtype)   # bf16 weights: MXU-native on
        self.b_stacked = b                       # v6e/v7x, halves weight DMA
        self.input_pad = D

    def __call__(self, x, hidden, cell):
        out_seq, h_out, c_out = cdbk_decoder_forward(
            x, hidden, cell, self.w_stacked, self.b_stacked)
        # torch's output.squeeze(0): drop the time dim only when seq_len == 1.
        out = out_seq[0] if out_seq.shape[0] == 1 else out_seq
        return out, h_out, c_out


def _reference_forward(x, hidden, cell, w_stacked, b_stacked):
    """Pure-jnp reference using the same packed bf16 params / f32 accumulation."""
    S, B, E = x.shape
    L, _, H = hidden.shape
    D = w_stacked.shape[1] - H
    x_p = x if E == D else jnp.pad(x, ((0, 0), (0, 0), (0, D - E)))

    h = [hidden[l].astype(jnp.float32) for l in range(L)]
    c = [cell[l].astype(jnp.float32) for l in range(L)]
    outs = []
    for t in range(S):
        inp = x_p[t].astype(jnp.float32)
        for l in range(L):
            if inp.shape[-1] < D:
                inp = jnp.pad(inp, ((0, 0), (0, D - inp.shape[-1])))
            xh = jnp.concatenate([inp, h[l]], axis=-1)
            gates = jnp.dot(xh.astype(w_stacked.dtype), w_stacked[l],
                            preferred_element_type=jnp.float32) + b_stacked[l]
            i_g = jax.nn.sigmoid(gates[:, 0 * H:1 * H])
            f_g = jax.nn.sigmoid(gates[:, 1 * H:2 * H])
            g_g = jnp.tanh(gates[:, 2 * H:3 * H])
            o_g = jax.nn.sigmoid(gates[:, 3 * H:4 * H])
            c[l] = f_g * c[l] + i_g * g_g
            h[l] = o_g * jnp.tanh(c[l])
            inp = h[l]
        outs.append(inp)
    out_seq = jnp.stack(outs, axis=0)
    out = out_seq[0] if S == 1 else out_seq
    return out, jnp.stack(h, 0), jnp.stack(c, 0)


if __name__ == "__main__":
    emb_dim, hid_dim, n_layers = 32, 32, 2
    batch = 8

    key = jax.random.PRNGKey(0)
    key, kh, kc, kp = jax.random.split(key, 4)
    hidden = jax.random.normal(kh, (n_layers, batch, hid_dim), jnp.float32)
    cell = jax.random.normal(kc, (n_layers, batch, hid_dim), jnp.float32)

    decoder = CdBkDecoderPallas(emb_dim, hid_dim, n_layers, dropout=0.5, key=kp)

    # --- single-step decode (the usual decoder call: seq_len == 1, squeeze(0)).
    key, kx = jax.random.split(key)
    x1 = jax.random.normal(kx, (1, batch, emb_dim), jnp.float32)
    out, h_out, c_out = decoder(x1, hidden, cell)
    jax.block_until_ready((out, h_out, c_out))

    ref_out, ref_h, ref_c = _reference_forward(
        x1, hidden, cell, decoder.w_stacked, decoder.b_stacked)

    assert out.shape == (batch, hid_dim)
    assert h_out.shape == (n_layers, batch, hid_dim)
    assert c_out.shape == (n_layers, batch, hid_dim)
    assert jnp.allclose(out, ref_out, atol=2e-3), float(
        jnp.max(jnp.abs(out - ref_out)))
    assert jnp.allclose(h_out, ref_h, atol=2e-3), float(
        jnp.max(jnp.abs(h_out - ref_h)))
    assert jnp.allclose(c_out, ref_c, atol=2e-3), float(
        jnp.max(jnp.abs(c_out - ref_c)))

    # --- multi-step sequence: exercises the time recurrence / resident weights.
    key, kx4 = jax.random.split(key)
    x4 = jax.random.normal(kx4, (4, batch, emb_dim), jnp.float32)
    out4, h4, c4 = decoder(x4, hidden, cell)
    jax.block_until_ready((out4, h4, c4))
    r_out4, r_h4, r_c4 = _reference_forward(
        x4, hidden, cell, decoder.w_stacked, decoder.b_stacked)
    assert out4.shape == (4, batch, hid_dim)
    assert jnp.allclose(out4, r_out4, atol=3e-3), float(
        jnp.max(jnp.abs(out4 - r_out4)))
    assert jnp.allclose(h4, r_h4, atol=3e-3), float(jnp.max(jnp.abs(h4 - r_h4)))
    assert jnp.allclose(c4, r_c4, atol=3e-3), float(jnp.max(jnp.abs(c4 - r_c4)))

    print("KERNEL_OK")
</pallas_src>

<mosaic_0001>
module attributes {stable_mosaic.version = 11 : i64} {
  func.func @kernel(%arg0: i32, %arg1: i32, %arg2: memref<1x8x32xf32, #tpu.memory_space<vmem>>, %arg3: memref<2x8x32xf32, #tpu.memory_space<vmem>>, %arg4: memref<2x8x32xf32, #tpu.memory_space<vmem>>, %arg5: memref<2x64x128xbf16, #tpu.memory_space<vmem>>, %arg6: memref<2x1x128xf32, #tpu.memory_space<vmem>>, %arg7: memref<1x8x32xf32, #tpu.memory_space<vmem>>, %arg8: memref<2x8x32xf32, #tpu.memory_space<vmem>>, %arg9: memref<2x8x32xf32, #tpu.memory_space<vmem>>, %arg10: memref<2x8x32xf32, #tpu.memory_space<vmem>>, %arg11: memref<2x8x32xf32, #tpu.memory_space<vmem>>, %arg12: memref<8x64xf32, #tpu.memory_space<vmem>>) attributes {dimension_semantics = [#tpu.dimension_semantics<arbitrary>, #tpu.dimension_semantics<arbitrary>], iteration_bounds = array<i64: 1, 2>, scalar_prefetch = 0 : i64, scratch_operands = 3 : i64, tpu.core_type = #tpu.core_type<tc>, window_params = [{transform_indices = @transform_0, window_bounds = array<i64: 1, 8, 32>}, {pipeline_mode = #tpu.pipeline_mode<synchronous>, transform_indices = @transform_1, window_bounds = array<i64: 2, 8, 32>}, {pipeline_mode = #tpu.pipeline_mode<synchronous>, transform_indices = @transform_2, window_bounds = array<i64: 2, 8, 32>}, {pipeline_mode = #tpu.pipeline_mode<synchronous>, transform_indices = @transform_3, window_bounds = array<i64: 2, 64, 128>}, {pipeline_mode = #tpu.pipeline_mode<synchronous>, transform_indices = @transform_4, window_bounds = array<i64: 2, 1, 128>}, {transform_indices = @transform_5, window_bounds = array<i64: 1, 8, 32>}, {pipeline_mode = #tpu.pipeline_mode<synchronous>, transform_indices = @transform_6, window_bounds = array<i64: 2, 8, 32>}, {pipeline_mode = #tpu.pipeline_mode<synchronous>, transform_indices = @transform_7, window_bounds = array<i64: 2, 8, 32>}]} {
    %c0_i32 = arith.constant 0 : i32
    %0 = arith.cmpi eq, %arg0, %c0_i32 : i32
    %1 = arith.extui %0 : i1 to i32
    %c0_i32_0 = arith.constant 0 : i32
    %2 = arith.cmpi ne, %1, %c0_i32_0 : i32
    scf.if %2 {
      %68 = arith.index_cast %arg1 : i32 to index
      %c0_26 = arith.constant 0 : index
      %c0_27 = arith.constant 0 : index
      %69 = vector.load %arg3[%68, %c0_26, %c0_27] : memref<2x8x32xf32, #tpu.memory_space<vmem>>, vector<1x8x32xf32>
      %70 = vector.shape_cast %69 : vector<1x8x32xf32> to vector<8x32xf32>
      %71 = arith.index_cast %arg1 : i32 to index
      %c0_28 = arith.constant 0 : index
      %c0_29 = arith.constant 0 : index
      %72 = vector.load %arg10[%71, %c0_28, %c0_29] : memref<2x8x32xf32, #tpu.memory_space<vmem>>, vector<1x8x32xf32>
      %73 = vector.shape_cast %72 : vector<1x8x32xf32> to vector<8x32xf32>
      %74 = vector.shape_cast %70 : vector<8x32xf32> to vector<1x8x32xf32>
      tpu.vector_store %arg10[%71, %c0_28, %c0_29], %74 {strides = array<i32>} : memref<2x8x32xf32, #tpu.memory_space<vmem>>, vector<1x8x32xf32>,
      %75 = arith.index_cast %arg1 : i32 to index
      %c0_30 = arith.constant 0 : index
      %c0_31 = arith.constant 0 : index
      %76 = vector.load %arg4[%75, %c0_30, %c0_31] : memref<2x8x32xf32, #tpu.memory_space<vmem>>, vector<1x8x32xf32>
      %77 = vector.shape_cast %76 : vector<1x8x32xf32> to vector<8x32xf32>
      %78 = arith.index_cast %arg1 : i32 to index
      %c0_32 = arith.constant 0 : index
      %c0_33 = arith.constant 0 : index
      %79 = vector.load %arg11[%78, %c0_32, %c0_33] : memref<2x8x32xf32, #tpu.memory_space<vmem>>, vector<1x8x32xf32>
      %80 = vector.shape_cast %79 : vector<1x8x32xf32> to vector<8x32xf32>
      %81 = vector.shape_cast %77 : vector<8x32xf32> to vector<1x8x32xf32>
      tpu.vector_store %arg11[%78, %c0_32, %c0_33], %81 {strides = array<i32>} : memref<2x8x32xf32, #tpu.memory_space<vmem>>, vector<1x8x32xf32>,
    } else {
    }
    %c0_i32_1 = arith.constant 0 : i32
    %3 = arith.cmpi eq, %arg1, %c0_i32_1 : i32
    %4 = arith.extui %3 : i1 to i32
    %c0_i32_2 = arith.constant 0 : i32
    %5 = arith.cmpi ne, %4, %c0_i32_2 : i32
    scf.if %5 {
      %c0_26 = arith.constant 0 : index
      %c0_27 = arith.constant 0 : index
      %c0_28 = arith.constant 0 : index
      %68 = vector.load %arg2[%c0_26, %c0_27, %c0_28] : memref<1x8x32xf32, #tpu.memory_space<vmem>>, vector<1x8x32xf32>
      %69 = vector.shape_cast %68 : vector<1x8x32xf32> to vector<8x32xf32>
      %c0_29 = arith.constant 0 : index
      %c0_30 = arith.constant 0 : index
      %70 = vector.load %arg12[%c0_29, %c0_30] : memref<8x64xf32, #tpu.memory_space<vmem>>, vector<8x32xf32>
      tpu.vector_store %arg12[%c0_29, %c0_30], %69 {strides = array<i32>} : memref<8x64xf32, #tpu.memory_space<vmem>>, vector<8x32xf32>,
    } else {
    }
    %c0_i32_3 = arith.constant 0 : i32
    %6 = arith.cmpi sgt, %arg1, %c0_i32_3 : i32
    %7 = arith.extui %6 : i1 to i32
    %c0_i32_4 = arith.constant 0 : i32
    %8 = arith.cmpi ne, %7, %c0_i32_4 : i32
    scf.if %8 {
      %c1_i32_26 = arith.constant 1 : i32
      %68 = arith.subi %arg1, %c1_i32_26 : i32
      %69 = arith.index_cast %68 : i32 to index
      %c0_27 = arith.constant 0 : index
      %c0_28 = arith.constant 0 : index
      %70 = vector.load %arg10[%69, %c0_27, %c0_28] : memref<2x8x32xf32, #tpu.memory_space<vmem>>, vector<1x8x32xf32>
      %71 = vector.shape_cast %70 : vector<1x8x32xf32> to vector<8x32xf32>
      %c0_29 = arith.constant 0 : index
      %c0_30 = arith.constant 0 : index
      %72 = vector.load %arg12[%c0_29, %c0_30] : memref<8x64xf32, #tpu.memory_space<vmem>>, vector<8x32xf32>
      tpu.vector_store %arg12[%c0_29, %c0_30], %71 {strides = array<i32>} : memref<8x64xf32, #tpu.memory_space<vmem>>, vector<8x32xf32>,
    } else {
    }
    %9 = arith.index_cast %arg1 : i32 to index
    %c0 = arith.constant 0 : index
    %c0_5 = arith.constant 0 : index
    %10 = vector.load %arg10[%9, %c0, %c0_5] : memref<2x8x32xf32, #tpu.memory_space<vmem>>, vector<1x8x32xf32>
    %11 = vector.shape_cast %10 : vector<1x8x32xf32> to vector<8x32xf32>
    %c0_6 = arith.constant 0 : index
    %c32 = arith.constant 32 : index
    %12 = vector.load %arg12[%c0_6, %c32] : memref<8x64xf32, #tpu.memory_space<vmem>>, vector<8x32xf32>
    tpu.vector_store %arg12[%c0_6, %c32], %11 {strides = array<i32>} : memref<8x64xf32, #tpu.memory_space<vmem>>, vector<8x32xf32>,
    %13 = arith.index_cast %arg1 : i32 to index
    %c0_7 = arith.constant 0 : index
    %c0_8 = arith.constant 0 : index
    %14 = vector.load %arg5[%13, %c0_7, %c0_8] : memref<2x64x128xbf16, #tpu.memory_space<vmem>>, vector<1x64x128xbf16>
    %15 = vector.shape_cast %14 : vector<1x64x128xbf16> to vector<64x128xbf16>
    %16 = arith.index_cast %arg1 : i32 to index
    %c0_9 = arith.constant 0 : index
    %c0_10 = arith.constant 0 : index
    %17 = vector.load %arg6[%16, %c0_9, %c0_10] : memref<2x1x128xf32, #tpu.memory_space<vmem>>, vector<1x1x128xf32>
    %18 = vector.shape_cast %17 : vector<1x1x128xf32> to vector<1x128xf32>
    %c0_11 = arith.constant 0 : index
    %c0_12 = arith.constant 0 : index
    %19 = vector.load %arg12[%c0_11, %c0_12] : memref<8x64xf32, #tpu.memory_space<vmem>>, vector<8x64xf32>
    %20 = arith.truncf %19 : vector<8x64xf32> to vector<8x64xbf16>
    %cst = arith.constant dense<0.000000e+00> : vector<8x128xf32>
    %21 = tpu.matmul %20, %15, %cst {dimension_numbers = #tpu.dot_dimension_numbers<[1], [0], [0], [1], [0, 0, 1, 1], [], []>} : vector<8x64xbf16>, vector<64x128xbf16>, vector<8x128xf32> -> vector<8x128xf32>
    %22 = vector.broadcast %18 : vector<1x128xf32> to vector<8x128xf32>
    %23 = arith.addf %21, %22 : vector<8x128xf32>
    %24 = vector.extract_strided_slice %23 {offsets = [0, 0], sizes = [8, 32], strides = [1, 1]} : vector<8x128xf32> to vector<8x32xf32>
    %25 = arith.negf %24 : vector<8x32xf32>
    %26 = math.exp %25 : vector<8x32xf32>
    %cst_13 = arith.constant 1.000000e+00 : f32
    %27 = vector.broadcast %cst_13 : f32 to vector<8x32xf32>
    %28 = arith.addf %27, %26 : vector<8x32xf32>
    %29 = arith.divf %27, %28 : vector<8x32xf32>
    %30 = vector.extract_strided_slice %23 {offsets = [0, 32], sizes = [8, 32], strides = [1, 1]} : vector<8x128xf32> to vector<8x32xf32>
    %31 = arith.negf %30 : vector<8x32xf32>
    %32 = math.exp %31 : vector<8x32xf32>
    %cst_14 = arith.constant 1.000000e+00 : f32
    %33 = vector.broadcast %cst_14 : f32 to vector<8x32xf32>
    %34 = arith.addf %33, %32 : vector<8x32xf32>
    %35 = arith.divf %33, %34 : vector<8x32xf32>
    %36 = vector.extract_strided_slice %23 {offsets = [0, 64], sizes = [8, 32], strides = [1, 1]} : vector<8x128xf32> to vector<8x32xf32>
    %37 = math.tanh %36 : vector<8x32xf32>
    %38 = vector.extract_strided_slice %23 {offsets = [0, 96], sizes = [8, 32], strides = [1, 1]} : vector<8x128xf32> to vector<8x32xf32>
    %39 = arith.negf %38 : vector<8x32xf32>
    %40 = math.exp %39 : vector<8x32xf32>
    %cst_15 = arith.constant 1.000000e+00 : f32
    %41 = vector.broadcast %cst_15 : f32 to vector<8x32xf32>
    %42 = arith.addf %41, %40 : vector<8x32xf32>
    %43 = arith.divf %41, %42 : vector<8x32xf32>
    %44 = arith.index_cast %arg1 : i32 to index
    %c0_16 = arith.constant 0 : index
    %c0_17 = arith.constant 0 : index
    %45 = vector.load %arg11[%44, %c0_16, %c0_17] : memref<2x8x32xf32, #tpu.memory_space<vmem>>, vector<1x8x32xf32>
    %46 = vector.shape_cast %45 : vector<1x8x32xf32> to vector<8x32xf32>
    %47 = arith.mulf %35, %46 : vector<8x32xf32>
    %48 = arith.mulf %29, %37 : vector<8x32xf32>
    %49 = arith.addf %47, %48 : vector<8x32xf32>
    %50 = math.tanh %49 : vector<8x32xf32>
    %51 = arith.mulf %43, %50 : vector<8x32xf32>
    %52 = arith.index_cast %arg1 : i32 to index
    %c0_18 = arith.constant 0 : index
    %c0_19 = arith.constant 0 : index
    %53 = vector.load %arg11[%52, %c0_18, %c0_19] : memref<2x8x32xf32, #tpu.memory_space<vmem>>, vector<1x8x32xf32>
    %54 = vector.shape_cast %53 : vector<1x8x32xf32> to vector<8x32xf32>
    %55 = vector.shape_cast %49 : vector<8x32xf32> to vector<1x8x32xf32>
    tpu.vector_store %arg11[%52, %c0_18, %c0_19], %55 {strides = array<i32>} : memref<2x8x32xf32, #tpu.memory_space<vmem>>, vector<1x8x32xf32>,
    %56 = arith.index_cast %arg1 : i32 to index
    %c0_20 = arith.constant 0 : index
    %c0_21 = arith.constant 0 : index
    %57 = vector.load %arg10[%56, %c0_20, %c0_21] : memref<2x8x32xf32, #tpu.memory_space<vmem>>, vector<1x8x32xf32>
    %58 = vector.shape_cast %57 : vector<1x8x32xf32> to vector<8x32xf32>
    %59 = vector.shape_cast %51 : vector<8x32xf32> to vector<1x8x32xf32>
    tpu.vector_store %arg10[%56, %c0_20, %c0_21], %59 {strides = array<i32>} : memref<2x8x32xf32, #tpu.memory_space<vmem>>, vector<1x8x32xf32>,
    %c1_i32 = arith.constant 1 : i32
    %60 = arith.cmpi eq, %arg1, %c1_i32 : i32
    %61 = arith.extui %60 : i1 to i32
    %c0_i32_22 = arith.constant 0 : i32
    %62 = arith.cmpi ne, %61, %c0_i32_22 : i32
    scf.if %62 {
      %c0_26 = arith.constant 0 : index
      %c0_27 = arith.constant 0 : index
      %c0_28 = arith.constant 0 : index
      %68 = vector.load %arg7[%c0_26, %c0_27, %c0_28] : memref<1x8x32xf32, #tpu.memory_space<vmem>>, vector<1x8x32xf32>
      %69 = vector.shape_cast %68 : vector<1x8x32xf32> to vector<8x32xf32>
      %70 = vector.shape_cast %51 : vector<8x32xf32> to vector<1x8x32xf32>
      tpu.vector_store %arg7[%c0_26, %c0_27, %c0_28], %70 {strides = array<i32>} : memref<1x8x32xf32, #tpu.memory_space<vmem>>, vector<1x8x32xf32>,
    } else {
    }
    %c0_i32_23 = arith.constant 0 : i32
    %63 = arith.cmpi eq, %arg0, %c0_i32_23 : i32
    %c1_i32_24 = arith.constant 1 : i32
    %64 = arith.cmpi eq, %arg1, %c1_i32_24 : i32
    %65 = arith.andi %63, %64 : i1
    %66 = arith.extui %65 : i1 to i32
    %c0_i32_25 = arith.constant 0 : i32
    %67 = arith.cmpi ne, %66, %c0_i32_25 : i32
    scf.if %67 {
      %c0_26 = arith.constant 0 : index
      %c0_27 = arith.constant 0 : index
      %c0_28 = arith.constant 0 : index
      %68 = vector.load %arg10[%c0_26, %c0_27, %c0_28] : memref<2x8x32xf32, #tpu.memory_space<vmem>>, vector<2x8x32xf32>
      %c0_29 = arith.constant 0 : index
      %c0_30 = arith.constant 0 : index
      %c0_31 = arith.constant 0 : index
      %69 = vector.load %arg8[%c0_29, %c0_30, %c0_31] : memref<2x8x32xf32, #tpu.memory_space<vmem>>, vector<2x8x32xf32>
      tpu.vector_store %arg8[%c0_29, %c0_30, %c0_31], %68 {strides = array<i32>} : memref<2x8x32xf32, #tpu.memory_space<vmem>>, vector<2x8x32xf32>,
      %c0_32 = arith.constant 0 : index
      %c0_33 = arith.constant 0 : index
      %c0_34 = arith.constant 0 : index
      %70 = vector.load %arg11[%c0_32, %c0_33, %c0_34] : memref<2x8x32xf32, #tpu.memory_space<vmem>>, vector<2x8x32xf32>
      %c0_35 = arith.constant 0 : index
      %c0_36 = arith.constant 0 : index
      %c0_37 = arith.constant 0 : index
      %71 = vector.load %arg9[%c0_35, %c0_36, %c0_37] : memref<2x8x32xf32, #tpu.memory_space<vmem>>, vector<2x8x32xf32>
      tpu.vector_store %arg9[%c0_35, %c0_36, %c0_37], %70 {strides = array<i32>} : memref<2x8x32xf32, #tpu.memory_space<vmem>>, vector<2x8x32xf32>,
    } else {
    }
    return
  }
  func.func @transform_0(%arg0: i32, %arg1: i32) -> (i32, i32, i32) {
    %c0_i32 = arith.constant 0 : i32
    %c0_i32_0 = arith.constant 0 : i32
    %c0_i32_1 = arith.constant 0 : i32
    return %arg0, %c0_i32, %c0_i32_0 : i32, i32, i32
  }
  func.func @transform_1(%arg0: i32, %arg1: i32) -> (i32, i32, i32) {
    %c0_i32 = arith.constant 0 : i32
    %c0_i32_0 = arith.constant 0 : i32
    %c0_i32_1 = arith.constant 0 : i32
    %c0_i32_2 = arith.constant 0 : i32
    return %c0_i32, %c0_i32_0, %c0_i32_1 : i32, i32, i32
  }
  func.func @transform_2(%arg0: i32, %arg1: i32) -> (i32, i32, i32) {
    %c0_i32 = arith.constant 0 : i32
    %c0_i32_0 = arith.constant 0 : i32
    %c0_i32_1 = arith.constant 0 : i32
    %c0_i32_2 = arith.constant 0 : i32
    return %c0_i32, %c0_i32_0, %c0_i32_1 : i32, i32, i32
  }
  func.func @transform_3(%arg0: i32, %arg1: i32) -> (i32, i32, i32) {
    %c0_i32 = arith.constant 0 : i32
    %c0_i32_0 = arith.constant 0 : i32
    %c0_i32_1 = arith.constant 0 : i32
    %c0_i32_2 = arith.constant 0 : i32
    return %c0_i32, %c0_i32_0, %c0_i32_1 : i32, i32, i32
  }
  func.func @transform_4(%arg0: i32, %arg1: i32) -> (i32, i32, i32) {
    %c0_i32 = arith.constant 0 : i32
    %c0_i32_0 = arith.constant 0 : i32
    %c0_i32_1 = arith.constant 0 : i32
    %c0_i32_2 = arith.constant 0 : i32
    return %c0_i32, %c0_i32_0, %c0_i32_1 : i32, i32, i32
  }
  func.func @transform_5(%arg0: i32, %arg1: i32) -> (i32, i32, i32) {
    %c0_i32 = arith.constant 0 : i32
    %c0_i32_0 = arith.constant 0 : i32
    %c0_i32_1 = arith.constant 0 : i32
    return %arg0, %c0_i32, %c0_i32_0 : i32, i32, i32
  }
  func.func @transform_6(%arg0: i32, %arg1: i32) -> (i32, i32, i32) {
    %c0_i32 = arith.constant 0 : i32
    %c0_i32_0 = arith.constant 0 : i32
    %c0_i32_1 = arith.constant 0 : i32
    %c0_i32_2 = arith.constant 0 : i32
    return %c0_i32, %c0_i32_0, %c0_i32_1 : i32, i32, i32
  }
  func.func @transform_7(%arg0: i32, %arg1: i32) -> (i32, i32, i32) {
    %c0_i32 = arith.constant 0 : i32
    %c0_i32_0 = arith.constant 0 : i32
    %c0_i32_1 = arith.constant 0 : i32
    %c0_i32_2 = arith.constant 0 : i32
    return %c0_i32, %c0_i32_0, %c0_i32_1 : i32, i32, i32
  }
}

</mosaic_0001>

<llo_original>
// kernel: cdbk_decoder_forward.1
$region0: #{cdbk_decoder_forward.1}
  #allocation0 [shape = 'u32[]', space=smem, size = 0x4, offset = 0x4, fixed_abs, tag = 'smem constant byte address 0x4 - core index']
  #allocation1 [shape = 'u32[144,128]{1,0:T(1,128)}', space=vmem, size = 0x12000, scoped, tag = 'internal scratch']
  #allocation2 [shape = 'f32[2,8,32]{2,1,0:T(8,128)}', space=vmem, size = 0x2000, scoped, tag = 'scratch operand']
  #allocation3 [shape = 'f32[2,8,32]{2,1,0:T(8,128)}', space=vmem, size = 0x2000, scoped, tag = 'scratch operand']
  #allocation4 [shape = 'f32[8,64]{1,0:T(8,128)}', space=vmem, size = 0x1000, scoped, tag = 'scratch operand']
  %s0 = inlined_call_operand.hbm [shape: f32[1,8,32], index: 0, kind: input, shape index: {}]
  %s1 = inlined_call_operand.hbm [shape: f32[2,8,32], index: 1, kind: input, shape index: {}]
  %s2 = inlined_call_operand.hbm [shape: f32[2,8,32], index: 2, kind: input, shape index: {}]
  %s3 = inlined_call_operand.hbm [shape: bf16[2,64,128], index: 3, kind: input, shape index: {}]
  %s4 = inlined_call_operand.vmem [shape: f32[2,1,128], index: 4, kind: input, shape index: {}]
  %s5 = inlined_call_operand.hbm [shape: f32[1,8,32], index: 5, kind: output, shape index: {0}]
  %s6 = inlined_call_operand.hbm [shape: f32[2,8,32], index: 6, kind: output, shape index: {1}]
  %s7 = inlined_call_operand.hbm [shape: f32[2,8,32], index: 7, kind: output, shape index: {2}]
  %8 = xla_tuple %s5, %s6, %s7
  %s9 = sld [smem:[#allocation0]]
  $region105: #{cdbk_decoder_forward.1} parent=0
    _
  %s11 = ssub.s32 1, %s9
  %s12 = scalar_select 0, %s11, %s9
  $region1: #{cdbk_decoder_forward.1} parent=0
    #allocation5 [shape = 'u8[4096]{0}', space=vmem, size = 0x1000, scoped, tag = 'input window, operand 0, single buffered']
    #allocation6 [shape = 's32[2]{0}', space=sflag, size = 0x8, scoped, tag = 'scoped memory for cdbk_decoder_forward.1']
    #allocation7 [shape = 's32[2]{0}', space=sflag, size = 0x8, scoped, tag = 'scoped memory for cdbk_decoder_forward.1']
    #allocation8 [shape = 'u8[8192]{0}', space=vmem, size = 0x2000, scoped, tag = 'input window, operand 1, single buffered']
    #allocation9 [shape = 's32[1]{0}', space=sflag, size = 0x4, scoped, tag = 'scoped memory for cdbk_decoder_forward.1']
    #allocation10 [shape = 'u8[8192]{0}', space=vmem, size = 0x2000, scoped, tag = 'input window, operand 2, single buffered']
    #allocation11 [shape = 'u8[32768]{0}', space=vmem, size = 0x8000, scoped, tag = 'input window, operand 3, single buffered']
    #allocation12 [shape = 's32[1]{0}', space=sflag, size = 0x4, scoped, tag = 'scoped memory for cdbk_decoder_forward.1']
    #allocation13 [shape = 'u8[4096]{0}', space=vmem, size = 0x1000, scoped, tag = 'output window, operand 0, single buffered']
    #allocation14 [shape = 'u8[8192]{0}', space=vmem, size = 0x2000, scoped, tag = 'output window, operand 1, single buffered']
    #allocation15 [shape = 's32[1]{0}', space=sflag, size = 0x4, scoped, tag = 'scoped memory for cdbk_decoder_forward.1']
    #allocation16 [shape = 'u8[8192]{0}', space=vmem, size = 0x2000, scoped, tag = 'output window, operand 2, single buffered']
    %13 = vsyncpa [#allocation6], 0
    %14 = vsyncpa [#allocation9], 0
    %15 = vsyncpa [#allocation12], 0
    %16 = vsyncpa [#allocation7], 0
    %17 = vsyncpa [#allocation15], 0
    loop: start=0, step=1, limit=4
    $region2: #{cdbk_decoder_forward.1} parent=1 // loop_pre_header
      _
    $region3: #{cdbk_decoder_forward.1} parent=1 // loop_header
      %s19 = sphi 0, %s23
      %p20 = scmp.ge.s32.totalorder %s19, 4
      %s26 = sphi 0, %s38
      %s27 = sphi 0, %s34
      %s28 = sphi 0, %s26
      %s29 = sphi 0, %s27
      %s30 = sphi 0, %s28
      %s31 = sphi 0, %s29
      %s41 = sphi 0, %s43
      %s44 = sphi 0, %s41
      %s45 = sphi 0, %s44
      %s61 = sphi 0, %s45
      %s65 = sphi 0, %s65
      %s67 = sphi 0, %s65
      %s68 = sphi 0, %s67
      %s82 = sphi 0, %s68
      %s86 = sphi 0, %s86
      %s88 = sphi 0, %s86
      %s89 = sphi 0, %s88
      %s103 = sphi 0, %s89
      %s107 = sphi 0, %s107
      %s109 = sphi 0, %s107
      %s110 = sphi 0, %s109
      %s124 = sphi 0, %s110
      %s128 = sphi 0, %s128
      %s130 = sphi 0, %s128
      %s131 = sphi 0, %s130
      %s145 = sphi 0, %s131
      %s151 = sphi 0, %s153
      %s154 = sphi 0, %s151
      %s155 = sphi 0, %s154
      %s171 = sphi 0, %s155
      %s175 = sphi 0, %s175
      %s177 = sphi 0, %s175
      %s178 = sphi 0, %s177
      %s192 = sphi 0, %s178
      %s196 = sphi 0, %s196
      %s198 = sphi 0, %s196
      %s199 = sphi 0, %s198
      %s213 = sphi 0, %s199
    $region4: #{cdbk_decoder_forward.1} parent=1 // loop_header_branch
      %22 = sbr.rel (%p20) target = $region8
    $region5: #{cdbk_decoder_forward.1} parent=1 // loop_body
      %s24 = ssub.s32 %s19, 1
      %s25 = ssub.s32 %s19, 2
      %s32 = sadd.s32 1, %s27
      %p33 = scmp.ge.s32.totalorder %s32, 2
      %s34 = scalar_select %p33, 0, %s32
      %s35 = sadd.s32 1, %s26
      %s36 = scalar_select %p33, %s35, %s26
      %p37 = scmp.ge.s32.totalorder %s36, 1
      %s38 = scalar_select %p37, 0, %s36
      %s39 = ssub.s32 %s26, %s38
      %p40 = scmp.eq.s32.totalorder %s39, 0
      %s42 = sadd.s32 %s41, 1
      %s43 = scalar_select %p40, %s41, %s42
      %p46 = pneg %p40
      %p47 = scmp.eq.s32.totalorder %s19, 1
      %p48 = por %p46, %p47
      %p49 = scmp.ne.s32.totalorder %s41, %s44
      %p50 = scmp.eq.s32.totalorder %s19, 0
      %p51 = por %p49, %p50
      %p52 = scmp.ne.s32.totalorder %s41, %s44
      %p53 = scmp.eq.s32.totalorder %s24, 1
      %p54 = por %p52, %p53
      %p55 = scmp.ne.s32.totalorder %s44, %s45
      %p56 = scmp.eq.s32.totalorder %s24, 0
      %p57 = por %p55, %p56
      %p58 = scmp.ne.s32.totalorder %s44, %s45
      %p59 = scmp.eq.s32.totalorder %s25, 1
      %p60 = por %p58, %p59
      %p62 = scmp.ne.s32.totalorder %s45, %s61
      %p63 = scmp.eq.s32.totalorder %s25, 0
      %p64 = por %p62, %p63
      %s66 = sadd.s32 %s65, 1
      %p69 = scmp.eq.s32.totalorder %s19, 1
      %p70 = scmp.ne.s32.totalorder %s65, %s67
      %p71 = scmp.eq.s32.totalorder %s19, 0
      %p72 = por %p70, %p71
      %p73 = scmp.ne.s32.totalorder %s65, %s67
      %p74 = scmp.eq.s32.totalorder %s24, 1
      %p75 = por %p73, %p74
      %p76 = scmp.ne.s32.totalorder %s67, %s68
      %p77 = scmp.eq.s32.totalorder %s24, 0
      %p78 = por %p76, %p77
      %p79 = scmp.ne.s32.totalorder %s67, %s68
      %p80 = scmp.eq.s32.totalorder %s25, 1
      %p81 = por %p79, %p80
      %p83 = scmp.ne.s32.totalorder %s68, %s82
      %p84 = scmp.eq.s32.totalorder %s25, 0
      %p85 = por %p83, %p84
      %s87 = sadd.s32 %s86, 1
      %p90 = scmp.eq.s32.totalorder %s19, 1
      %p91 = scmp.ne.s32.totalorder %s86, %s88
      %p92 = scmp.eq.s32.totalorder %s19, 0
      %p93 = por %p91, %p92
      %p94 = scmp.ne.s32.totalorder %s86, %s88
      %p95 = scmp.eq.s32.totalorder %s24, 1
      %p96 = por %p94, %p95
      %p97 = scmp.ne.s32.totalorder %s88, %s89
      %p98 = scmp.eq.s32.totalorder %s24, 0
      %p99 = por %p97, %p98
      %p100 = scmp.ne.s32.totalorder %s88, %s89
      %p101 = scmp.eq.s32.totalorder %s25, 1
      %p102 = por %p100, %p101
      %p104 = scmp.ne.s32.totalorder %s89, %s103
      %p105 = scmp.eq.s32.totalorder %s25, 0
      %p106 = por %p104, %p105
      %s108 = sadd.s32 %s107, 1
      %p111 = scmp.eq.s32.totalorder %s19, 1
      %p112 = scmp.ne.s32.totalorder %s107, %s109
      %p113 = scmp.eq.s32.totalorder %s19, 0
      %p114 = por %p112, %p113
      %p115 = scmp.ne.s32.totalorder %s107, %s109
      %p116 = scmp.eq.s32.totalorder %s24, 1
      %p117 = por %p115, %p116
      %p118 = scmp.ne.s32.totalorder %s109, %s110
      %p119 = scmp.eq.s32.totalorder %s24, 0
      %p120 = por %p118, %p119
      %p121 = scmp.ne.s32.totalorder %s109, %s110
      %p122 = scmp.eq.s32.totalorder %s25, 1
      %p123 = por %p121, %p122
      %p125 = scmp.ne.s32.totalorder %s110, %s124
      %p126 = scmp.eq.s32.totalorder %s25, 0
      %p127 = por %p125, %p126
      %s129 = sadd.s32 %s128, 1
      %p132 = scmp.eq.s32.totalorder %s19, 1
      %p133 = scmp.ne.s32.totalorder %s128, %s130
      %p134 = scmp.eq.s32.totalorder %s19, 0
      %p135 = por %p133, %p134
      %p136 = scmp.ne.s32.totalorder %s128, %s130
      %p137 = scmp.eq.s32.totalorder %s24, 1
      %p138 = por %p136, %p137
      %p139 = scmp.ne.s32.totalorder %s130, %s131
      %p140 = scmp.eq.s32.totalorder %s24, 0
      %p141 = por %p139, %p140
      %p142 = scmp.ne.s32.totalorder %s130, %s131
      %p143 = scmp.eq.s32.totalorder %s25, 1
      %p144 = por %p142, %p143
      %p146 = scmp.ne.s32.totalorder %s131, %s145
      %p147 = scmp.eq.s32.totalorder %s25, 0
      %p148 = por %p146, %p147
      %s149 = ssub.s32 %s26, %s38
      %p150 = scmp.eq.s32.totalorder %s149, 0
      %s152 = sadd.s32 %s151, 1
      %s153 = scalar_select %p150, %s151, %s152
      %p156 = pneg %p150
      %p157 = scmp.eq.s32.totalorder %s19, 1
      %p158 = por %p156, %p157
      %p159 = scmp.ne.s32.totalorder %s151, %s154
      %p160 = scmp.eq.s32.totalorder %s19, 0
      %p161 = por %p159, %p160
      %p162 = scmp.ne.s32.totalorder %s151, %s154
      %p163 = scmp.eq.s32.totalorder %s24, 1
      %p164 = por %p162, %p163
      %p165 = scmp.ne.s32.totalorder %s154, %s155
      %p166 = scmp.eq.s32.totalorder %s24, 0
      %p167 = por %p165, %p166
      %p168 = scmp.ne.s32.totalorder %s154, %s155
      %p169 = scmp.eq.s32.totalorder %s25, 1
      %p170 = por %p168, %p169
      %p172 = scmp.ne.s32.totalorder %s155, %s171
      %p173 = scmp.eq.s32.totalorder %s25, 0
      %p174 = por %p172, %p173
      %s176 = sadd.s32 %s175, 1
      %p179 = scmp.eq.s32.totalorder %s19, 1
      %p180 = scmp.ne.s32.totalorder %s175, %s177
      %p181 = scmp.eq.s32.totalorder %s19, 0
      %p182 = por %p180, %p181
      %p183 = scmp.ne.s32.totalorder %s175, %s177
      %p184 = scmp.eq.s32.totalorder %s24, 1
      %p185 = por %p183, %p184
      %p186 = scmp.ne.s32.totalorder %s177, %s178
      %p187 = scmp.eq.s32.totalorder %s24, 0
      %p188 = por %p186, %p187
      %p189 = scmp.ne.s32.totalorder %s177, %s178
      %p190 = scmp.eq.s32.totalorder %s25, 1
      %p191 = por %p189, %p190
      %p193 = scmp.ne.s32.totalorder %s178, %s192
      %p194 = scmp.eq.s32.totalorder %s25, 0
      %p195 = por %p193, %p194
      %s197 = sadd.s32 %s196, 1
      %p200 = scmp.eq.s32.totalorder %s19, 1
      %p201 = scmp.ne.s32.totalorder %s196, %s198
      %p202 = scmp.eq.s32.totalorder %s19, 0
      %p203 = por %p201, %p202
      %p204 = scmp.ne.s32.totalorder %s196, %s198
      %p205 = scmp.eq.s32.totalorder %s24, 1
      %p206 = por %p204, %p205
      %p207 = scmp.ne.s32.totalorder %s198, %s199
      %p208 = scmp.eq.s32.totalorder %s24, 0
      %p209 = por %p207, %p208
      %p210 = scmp.ne.s32.totalorder %s198, %s199
      %p211 = scmp.eq.s32.totalorder %s25, 1
      %p212 = por %p210, %p211
      %p214 = scmp.ne.s32.totalorder %s199, %s213
      %p215 = scmp.eq.s32.totalorder %s25, 0
      %p216 = por %p214, %p215
      %p217 = scmp.le.s32.totalorder 1, %s19
      %p218 = scmp.lt.s32.totalorder %s19, 3
      %p219 = pnand %p217, %p218
      %p220 = pneg %p219
      // Predicated region
      $region9: #{cdbk_decoder_forward.1} parent=5 // pred_check
        _
      $region10: #{cdbk_decoder_forward.1} parent=5 // pred_check_branch
        %222 = sbr.rel (%p219) target = $region12
      $region11: #{cdbk_decoder_forward.1} parent=5 // pred_region
        %s223 = ssub.s32 %s19, 1
        // Predicated region
        $region13: #{cdbk_decoder_forward.1} parent=11 // pred_check
          %p224 = pneg %p57
        $region14: #{cdbk_decoder_forward.1} parent=11 // pred_check_branch
          %226 = sbr.rel (%p224) target = $region16
        $region15: #{cdbk_decoder_forward.1} parent=11 // pred_region
          %s228 = ssub.s32 128, 128
          %229 = vsyncadd [#allocation6], %s228
          %s230 = smul.addr %s28, 128
          %s231 = scalar_lea.hbm %s0, %s230
          %s233 = sshll.u32 [#allocation5], 4
          %s234 = int_to_ptr.vmem [resolvable:$true] %s233
          %236 = dma.hbm_to_vmem [thread:$0]  %s231, 128, %s234, [#allocation6]
        $region16: #{cdbk_decoder_forward.1} parent=11 // pred_fallthru
          _
        // Predicated region
        $region17: #{cdbk_decoder_forward.1} parent=11 // pred_check
          %p237 = pneg %p78
        $region18: #{cdbk_decoder_forward.1} parent=11 // pred_check_branch
          %239 = sbr.rel (%p237) target = $region20
        $region19: #{cdbk_decoder_forward.1} parent=11 // pred_region
          %s241 = ssub.s32 256, 256
          %242 = vsyncadd [#allocation9], %s241
          %s243 = sshll.u32 [#allocation8], 4
          %s244 = int_to_ptr.vmem [resolvable:$true] %s243
          %249 = dma.hbm_to_vmem [thread:$0]  %s1, 256, %s244, [#allocation9], 128, 128, 8
        $region20: #{cdbk_decoder_forward.1} parent=11 // pred_fallthru
          _
        // Predicated region
        $region21: #{cdbk_decoder_forward.1} parent=11 // pred_check
          %p250 = pneg %p99
        $region22: #{cdbk_decoder_forward.1} parent=11 // pred_check_branch
          %252 = sbr.rel (%p250) target = $region24
        $region23: #{cdbk_decoder_forward.1} parent=11 // pred_region
          %s254 = ssub.s32 256, 256
          %255 = vsyncadd [#allocation9], %s254
          %s256 = sshll.u32 [#allocation10], 4
          %s257 = int_to_ptr.vmem [resolvable:$true] %s256
          %262 = dma.hbm_to_vmem [thread:$0]  %s2, 256, %s257, [#allocation9], 128, 128, 8
        $region24: #{cdbk_decoder_forward.1} parent=11 // pred_fallthru
          _
        // Predicated region
        $region25: #{cdbk_decoder_forward.1} parent=11 // pred_check
          %p263 = pneg %p120
        $region26: #{cdbk_decoder_forward.1} parent=11 // pred_check_branch
          %265 = sbr.rel (%p263) target = $region28
        $region27: #{cdbk_decoder_forward.1} parent=11 // pred_region
          %s267 = ssub.s32 1024, 1024
          %268 = vsyncadd [#allocation12], %s267
          %s269 = sshll.u32 [#allocation11], 4
          %s270 = int_to_ptr.vmem [resolvable:$true] %s269
          %275 = dma.hbm_to_vmem [thread:$0]  %s3, 1024, %s270, [#allocation12], 64, 64, 4
        $region28: #{cdbk_decoder_forward.1} parent=11 // pred_fallthru
          _
        // Predicated region
        $region29: #{cdbk_decoder_forward.1} parent=11 // pred_check
          %p276 = pneg %p141
        $region30: #{cdbk_decoder_forward.1} parent=11 // pred_check_branch
          %278 = sbr.rel (%p276) target = $region32
        $region31: #{cdbk_decoder_forward.1} parent=11 // pred_region
          _
        $region32: #{cdbk_decoder_forward.1} parent=11 // pred_fallthru
          _
      $region12: #{cdbk_decoder_forward.1} parent=5 // pred_fallthru
        _
      %p279 = scmp.lt.s32.totalorder %s19, 2
      // Predicated region
      $region33: #{cdbk_decoder_forward.1} parent=5 // pred_check
        %p280 = pneg %p279
      $region34: #{cdbk_decoder_forward.1} parent=5 // pred_check_branch
        %282 = sbr.rel (%p280) target = $region36
      $region35: #{cdbk_decoder_forward.1} parent=5 // pred_region
        _
      $region36: #{cdbk_decoder_forward.1} parent=5 // pred_fallthru
        _
      %p283 = scmp.le.s32.totalorder 1, %s19
      %p284 = scmp.lt.s32.totalorder %s19, 3
      %p285 = pnand %p283, %p284
      %p286 = pneg %p285
      // Predicated region
      $region37: #{cdbk_decoder_forward.1} parent=5 // pred_check
        _
      $region38: #{cdbk_decoder_forward.1} parent=5 // pred_check_branch
        %288 = sbr.rel (%p285) target = $region40
      $region39: #{cdbk_decoder_forward.1} parent=5 // pred_region
        %s289 = ssub.s32 %s19, 1
        // Predicated region
        $region41: #{cdbk_decoder_forward.1} parent=39 // pred_check
          %p290 = pneg %p57
        $region42: #{cdbk_decoder_forward.1} parent=39 // pred_check_branch
          %292 = sbr.rel (%p290) target = $region44
        $region43: #{cdbk_decoder_forward.1} parent=39 // pred_region
          %293 = dma.done [#allocation6], 128
        $region44: #{cdbk_decoder_forward.1} parent=39 // pred_fallthru
          _
        // Predicated region
        $region45: #{cdbk_decoder_forward.1} parent=39 // pred_check
          %p294 = pneg %p78
        $region46: #{cdbk_decoder_forward.1} parent=39 // pred_check_branch
          %296 = sbr.rel (%p294) target = $region48
        $region47: #{cdbk_decoder_forward.1} parent=39 // pred_region
          %297 = dma.done [#allocation9], 256
        $region48: #{cdbk_decoder_forward.1} parent=39 // pred_fallthru
          _
        // Predicated region
        $region49: #{cdbk_decoder_forward.1} parent=39 // pred_check
          %p298 = pneg %p99
        $region50: #{cdbk_decoder_forward.1} parent=39 // pred_check_branch
          %300 = sbr.rel (%p298) target = $region52
        $region51: #{cdbk_decoder_forward.1} parent=39 // pred_region
          %301 = dma.done [#allocation9], 256
        $region52: #{cdbk_decoder_forward.1} parent=39 // pred_fallthru
          _
        // Predicated region
        $region53: #{cdbk_decoder_forward.1} parent=39 // pred_check
          %p302 = pneg %p120
        $region54: #{cdbk_decoder_forward.1} parent=39 // pred_check_branch
          %304 = sbr.rel (%p302) target = $region56
        $region55: #{cdbk_decoder_forward.1} parent=39 // pred_region
          %305 = dma.done [#allocation12], 1024
        $region56: #{cdbk_decoder_forward.1} parent=39 // pred_fallthru
          _
        %p306 = pneg %p57
        %p307 = pneg %p54
        %p308 = pneg %p78
        %p309 = pneg %p75
        %p310 = pneg %p99
        %p311 = pneg %p96
        %p312 = pneg %p120
        %p313 = pneg %p117
        %p314 = pneg %p141
        %p315 = pneg %p138
        %p316 = pneg %p167
        %p317 = pneg %p164
        %p318 = pneg %p188
        %p319 = pneg %p185
        %p320 = pneg %p209
        %p321 = pneg %p206
        %p323 = scmp.eq.s32.totalorder %s28, 0
        // Predicated region
        $region57: #{cdbk_decoder_forward.1} parent=39 // pred_check
          %p324 = pneg %p323
        $region58: #{cdbk_decoder_forward.1} parent=39 // pred_check_branch
          %326 = sbr.rel (%p324) target = $region60
        $region59: #{cdbk_decoder_forward.1} parent=39 // pred_region
          %s327 = smul.u32 %s29, 8
          %s328 = scalar_lea.vmem [#allocation8], %s327
          %v329 = vld [vmem:[%s328] sm:$0xff]
          %s330 = scalar_lea.vmem [#allocation2], %s327
          %vm331 = vcmask 261120
          %332 = vst.msk [vmem:[%s330] sm:$0xff] %vm331, %v329
          %s333 = scalar_lea.vmem [#allocation10], %s327
          %v334 = vld [vmem:[%s333] sm:$0xff]
          %s335 = scalar_lea.vmem [#allocation3], %s327
          %336 = vst.msk [vmem:[%s335] sm:$0xff] %vm331, %v334
        $region60: #{cdbk_decoder_forward.1} parent=39 // pred_fallthru
          _
        %p337 = scmp.eq.s32.totalorder %s29, 0
        // Predicated region
        $region61: #{cdbk_decoder_forward.1} parent=39 // pred_check
          %p338 = pneg %p337
        $region62: #{cdbk_decoder_forward.1} parent=39 // pred_check_branch
          %340 = sbr.rel (%p338) target = $region64
        $region63: #{cdbk_decoder_forward.1} parent=39 // pred_region
          %v341 = vld [vmem:[#allocation5] sm:$0xff]
          %vm342 = vcmask 261120
          %343 = vst.msk [vmem:[#allocation4] sm:$0xff] %vm342, %v341
        $region64: #{cdbk_decoder_forward.1} parent=39 // pred_fallthru
          _
        %p344 = scmp.gt.s32.totalorder %s29, 0
        // Predicated region
        $region65: #{cdbk_decoder_forward.1} parent=39 // pred_check
          %p345 = pneg %p344
        $region66: #{cdbk_decoder_forward.1} parent=39 // pred_check_branch
          %347 = sbr.rel (%p345) target = $region68
        $region67: #{cdbk_decoder_forward.1} parent=39 // pred_region
          %s348 = ssub.s32 %s29, 1
          %s349 = smul.u32 %s348, 8
          %s350 = scalar_lea.vmem [#allocation2], %s349
          %v351 = vld [vmem:[%s350] sm:$0xff]
          %vm352 = vcmask 261120
          %353 = vst.msk [vmem:[#allocation4] sm:$0xff] %vm352, %v351
        $region68: #{cdbk_decoder_forward.1} parent=39 // pred_fallthru
          _
        %s354 = smul.u32 %s29, 8
        %s355 = scalar_lea.vmem [#allocation2], %s354
        %v356 = vld [vmem:[%s355] sm:$0xff]
        %358 = vrot.lane.b32.xlu0 %v356, 32
        %v359 = vpop.permute.xlu0 %358
        %vm361 = vcmask 523520
        %362 = vst.msk [vmem:[#allocation4] sm:$0xff] %vm361, %v359
        %s363 = smul.addr %s354, 4
        %s364 = scalar_lea.vmem [#allocation11], %s363
        %v365 = vld [vmem:[%s364] sm:$0xf]
        %v366 = vld [vmem:[%s364 + $0x4] sm:$0xf]
        %v367 = vld [vmem:[%s364 + $0x8] sm:$0xf]
        %v368 = vld [vmem:[%s364 + $0xc] sm:$0xf]
        %v369 = vld [vmem:[%s364 + $0x10] sm:$0xf]
        %v370 = vld [vmem:[%s364 + $0x14] sm:$0xf]
        %v371 = vld [vmem:[%s364 + $0x18] sm:$0xf]
        %v372 = vld [vmem:[%s364 + $0x1c] sm:$0xf]
        %s373 = scalar_lea.vmem %s4, %s29
        %v374 = vld [vmem:[%s373] sm:$0x1]
        %v375 = vld [vmem:[#allocation4] sm:$0xff]
        %v376 = vpack.c.bf16 %v375, %v375
        %v378 = vlaneseq
        %v379 = vshrl.u32 %v378, 7
        %v380 = vsub.s32 0, %v379
        %v381 = vrot.slane %v374, %v380
        %v391 = vunpack.c.l.b16 %v365
        %v392 = vunpack.c.l.b16 %v366
        %v393 = vunpack.c.l.b16 %v367
        %v394 = vunpack.c.l.b16 %v368
        %v395 = vunpack.c.l.b16 %v369
        %v396 = vunpack.c.l.b16 %v370
        %v397 = vunpack.c.l.b16 %v371
        %v398 = vunpack.c.l.b16 %v372
        %v399 = vpack.c.b16 %v392, %v391
        %v400 = vpack.c.b16 %v394, %v393
        %v401 = vpack.c.b16 %v396, %v395
        %v402 = vpack.c.b16 %v398, %v397
        %vm407 = vcmask 523264
        %v409 = vsel %vm407, %v376, 0
        %411 = vmatprep.subr.bf16.mxu0 0
        %412 = vmatpush1.bf16.msra.mxu0 0
        %413 = vmatprep.subr.bf16.mxu0 0
        %414 = vmatpush1.bf16.msra.mxu0 0
        %415 = vmatprep.subr.bf16.mxu0 0
        %416 = vmatpush1.bf16.msra.mxu0 0
        %417 = vmatprep.subr.bf16.mxu0 0
        %418 = vmatpush1.bf16.msra.mxu0 0
        %419 = vmatprep.subr.bf16.mxu0 0
        %420 = vmatpush1.bf16.msra.mxu0 %v402
        %421 = vmatprep.subr.bf16.mxu0 0
        %422 = vmatpush1.bf16.msra.mxu0 %v401
        %423 = vmatprep.subr.bf16.mxu0 0
        %424 = vmatpush1.bf16.msra.mxu0 %v400
        %425 = vmatprep.subr.bf16.mxu0 0
        %426 = vmatpush1.bf16.msra.mxu0 %v399
        %427 = vmatprep.subr.bf16.mxu0 0
        %428 = vmatpush2.bf16.msra.mxu0 0
        %429 = vmatprep.subr.bf16.mxu0 0
        %430 = vmatpush2.bf16.msra.mxu0 0
        %431 = vmatprep.subr.bf16.mxu0 0
        %432 = vmatpush2.bf16.msra.mxu0 0
        %433 = vmatprep.subr.bf16.mxu0 0
        %434 = vmatpush2.bf16.msra.mxu0 0
        %435 = vmatprep.subr.bf16.mxu0 0
        %436 = vmatpush2.bf16.msra.mxu0 0
        %437 = vmatprep.subr.bf16.mxu0 0
        %438 = vmatpush2.bf16.msra.mxu0 0
        %439 = vmatprep.subr.bf16.mxu0 0
        %440 = vmatpush2.bf16.msra.mxu0 0
        %441 = vmatprep.subr.bf16.mxu0 0
        %442 = vmatpush2.bf16.msra.mxu0 0
        %443 = vmatprep.mubr.bf16.mxu0 0
        %444 = vmatmul.mubr.bf16.gmra.mxu0 %v409
        %v445 = vpop.f32.mrf.mxu0
        %v446 = vadd.f32 %v381, %v445
        %v447 = vpop.f32.mrf.mxu0
        %v448 = vpop.f32.mrf.mxu0
        %v449 = vpop.f32.mrf.mxu0
        %450 = vdwg.mxu0
        %v451 = vxor.u32 %v446, 2147483648
        %v452 = vmul.f32 %v451, 1.442695
        %v453 = vpow.pop %v452
        %v454 = vadd.f32 %v453, 1.0
        %v455 = vrcp.pop %v454
        %v456 = vmul.f32 1.0, %v455
        %v457 = vtanh.pop %v446
        %s458 = scalar_lea.vmem [#allocation3], %s354
        %v459 = vld [vmem:[%s458] sm:$0xff]
        %461 = vrot.lane.b32.xlu0 %v459, 32
        %v462 = vpop.permute.xlu0 %461
        %v464 = vmul.f32 %v456, %v462
        %466 = vrot.lane.b32.xlu0 %v457, 64
        %v467 = vpop.permute.xlu0 %466
        %v469 = vmul.f32 %v456, %v467
        %471 = vrot.lane.b32.xlu0 %v469, 32
        %v472 = vpop.permute.xlu0 %471
        %v474 = vadd.f32 %v464, %v472
        %v475 = vtanh.pop %v474
        %477 = vrot.lane.b32.xlu0 %v475, 64
        %v478 = vpop.permute.xlu0 %477
        %v480 = vmul.f32 %v456, %v478
        %482 = vrot.lane.b32.xlu0 %v474, 96
        %v483 = vpop.permute.xlu0 %482
        %vm485 = vcmask 261120
        %486 = vst.msk [vmem:[%s458] sm:$0xff] %vm485, %v483
        %488 = vrot.lane.b32.xlu0 %v480, 32
        %v489 = vpop.permute.xlu0 %488
        %491 = vst.msk [vmem:[%s355] sm:$0xff] %vm485, %v489
        %p492 = scmp.eq.s32.totalorder %s29, 1
        // Predicated region
        $region69: #{cdbk_decoder_forward.1} parent=39 // pred_check
          %p493 = pneg %p492
        $region70: #{cdbk_decoder_forward.1} parent=39 // pred_check_branch
          %495 = sbr.rel (%p493) target = $region72
        $region71: #{cdbk_decoder_forward.1} parent=39 // pred_region
          %496 = vst.msk [vmem:[#allocation13] sm:$0xff] %vm485, %v489
        $region72: #{cdbk_decoder_forward.1} parent=39 // pred_fallthru
          _
        %p497 = pnand %p323, %p492
        %p498 = pneg %p497
        // Predicated region
        $region73: #{cdbk_decoder_forward.1} parent=39 // pred_check
          _
        $region74: #{cdbk_decoder_forward.1} parent=39 // pred_check_branch
          %500 = sbr.rel (%p497) target = $region76
        $region75: #{cdbk_decoder_forward.1} parent=39 // pred_region
          %v501 = vld [vmem:[#allocation2] sm:$0xff]
          %v502 = vld [vmem:[#allocation2 + $0x8] sm:$0xff]
          %503 = vst.msk [vmem:[#allocation14] sm:$0xff] %vm485, %v501
          %504 = vst.msk [vmem:[#allocation14 + $0x8] sm:$0xff] %vm485, %v502
          %v505 = vld [vmem:[#allocation3] sm:$0xff]
          %v506 = vld [vmem:[#allocation3 + $0x8] sm:$0xff]
          %507 = vst.msk [vmem:[#allocation16] sm:$0xff] %vm485, %v505
          %508 = vst.msk [vmem:[#allocation16 + $0x8] sm:$0xff] %vm485, %v506
        $region76: #{cdbk_decoder_forward.1} parent=39 // pred_fallthru
          _
        // Predicated region
        $region77: #{cdbk_decoder_forward.1} parent=39 // pred_check
          %p509 = pneg %p164
        $region78: #{cdbk_decoder_forward.1} parent=39 // pred_check_branch
          %511 = sbr.rel (%p509) target = $region80
        $region79: #{cdbk_decoder_forward.1} parent=39 // pred_region
          %s513 = ssub.s32 128, 128
          %514 = vsyncadd [#allocation7], %s513
          %s515 = smul.addr %s28, 128
          %s516 = scalar_lea.hbm %s5, %s515
          %s518 = sshll.u32 [#allocation13], 4
          %s519 = int_to_ptr.vmem [resolvable:$true] %s518
          %521 = dma.vmem_to_hbm [thread:$0]  %s519, 128, %s516, [#allocation7]
        $region80: #{cdbk_decoder_forward.1} parent=39 // pred_fallthru
          _
        // Predicated region
        $region81: #{cdbk_decoder_forward.1} parent=39 // pred_check
          %p522 = pneg %p185
        $region82: #{cdbk_decoder_forward.1} parent=39 // pred_check_branch
          %524 = sbr.rel (%p522) target = $region84
        $region83: #{cdbk_decoder_forward.1} parent=39 // pred_region
          %s526 = ssub.s32 256, 256
          %527 = vsyncadd [#allocation15], %s526
          %s528 = sshll.u32 [#allocation14], 4
          %s529 = int_to_ptr.vmem [resolvable:$true] %s528
          %534 = dma.vmem_to_hbm [thread:$0]  %s529, 256, %s6, [#allocation15], 128, 128, 8
        $region84: #{cdbk_decoder_forward.1} parent=39 // pred_fallthru
          _
        // Predicated region
        $region85: #{cdbk_decoder_forward.1} parent=39 // pred_check
          %p535 = pneg %p206
        $region86: #{cdbk_decoder_forward.1} parent=39 // pred_check_branch
          %537 = sbr.rel (%p535) target = $region88
        $region87: #{cdbk_decoder_forward.1} parent=39 // pred_region
          %s539 = ssub.s32 256, 256
          %540 = vsyncadd [#allocation15], %s539
          %s541 = sshll.u32 [#allocation16], 4
          %s542 = int_to_ptr.vmem [resolvable:$true] %s541
          %547 = dma.vmem_to_hbm [thread:$0]  %s542, 256, %s7, [#allocation15], 128, 128, 8
        $region88: #{cdbk_decoder_forward.1} parent=39 // pred_fallthru
          _
        // Predicated region
        $region89: #{cdbk_decoder_forward.1} parent=39 // pred_check
          %p548 = pneg %p164
        $region90: #{cdbk_decoder_forward.1} parent=39 // pred_check_branch
          %550 = sbr.rel (%p548) target = $region92
        $region91: #{cdbk_decoder_forward.1} parent=39 // pred_region
          %551 = dma.done [#allocation7], 128
        $region92: #{cdbk_decoder_forward.1} parent=39 // pred_fallthru
          _
        // Predicated region
        $region93: #{cdbk_decoder_forward.1} parent=39 // pred_check
          %p552 = pneg %p185
        $region94: #{cdbk_decoder_forward.1} parent=39 // pred_check_branch
          %554 = sbr.rel (%p552) target = $region96
        $region95: #{cdbk_decoder_forward.1} parent=39 // pred_region
          %555 = dma.done [#allocation15], 256
        $region96: #{cdbk_decoder_forward.1} parent=39 // pred_fallthru
          _
        // Predicated region
        $region97: #{cdbk_decoder_forward.1} parent=39 // pred_check
          %p556 = pneg %p206
        $region98: #{cdbk_decoder_forward.1} parent=39 // pred_check_branch
          %558 = sbr.rel (%p556) target = $region100
        $region99: #{cdbk_decoder_forward.1} parent=39 // pred_region
          %559 = dma.done [#allocation15], 256
        $region100: #{cdbk_decoder_forward.1} parent=39 // pred_fallthru
          _
      $region40: #{cdbk_decoder_forward.1} parent=5 // pred_fallthru
        _
      %p560 = scmp.le.s32.totalorder 2, %s19
      // Predicated region
      $region101: #{cdbk_decoder_forward.1} parent=5 // pred_check
        %p561 = pneg %p560
      $region102: #{cdbk_decoder_forward.1} parent=5 // pred_check_branch
        %563 = sbr.rel (%p561) target = $region104
      $region103: #{cdbk_decoder_forward.1} parent=5 // pred_region
        %s564 = ssub.s32 %s19, 2
      $region104: #{cdbk_decoder_forward.1} parent=5 // pred_fallthru
        _
    $region6: #{cdbk_decoder_forward.1} parent=1 // loop_footer
      %s23 = sadd.s32 1, %s19
    $region7: #{cdbk_decoder_forward.1} parent=1 // loop_footer_branch
      %18 = sbr.rel target = $region3
    $region8: #{cdbk_decoder_forward.1} parent=1 // loop_exit
      _
    %565 = vsyncpa [#allocation6], 1
    %s566 = scalar_lea.sflag [#allocation6], 1
    %567 = vsyncpa %s566, 1
    %568 = vsyncpa [#allocation9], 1
    %569 = vsyncpa [#allocation12], 1
    %570 = vsyncpa [#allocation7], 1
    %s571 = scalar_lea.sflag [#allocation7], 1
    %572 = vsyncpa %s571, 1
    %573 = vsyncpa [#allocation15], 1

</llo_original>
